<compile_context>
chip_gen: v7x
topology: tpu7x:2x2x1
jax: 0.10.0
libtpu: 0.0.40
codegen_flags: <defaults>
</compile_context>

<pallas_src>
import functools

import jax
import jax.numpy as jnp
from jax.experimental import pallas as pl
from jax.experimental.pallas import tpu as pltpu


def _round_up(n, m):
    return ((n + m - 1) // m) * m


def encoder_kernel(x_ref, a_ref, w_ref, b_ref, o_ref):
    """y = relu([x, a] @ W + b), with the concat fused via a split contraction.

    x_ref : (tile_b, 1)        first feature column
    a_ref : (tile_b, num_pcs)  remaining feature columns
    w_ref : (d_in, units)      weight, pre-transposed at init to (in, out)
    b_ref : (1, units)         bias
    o_ref : (tile_b, units)    output tile
    """
    x = x_ref[...]                      # (B, 1)
    a = a_ref[...]                      # (B, num_pcs)
    w = w_ref[...]                      # (d_in, U)
    b = b_ref[...]                      # (1, U)

    d_in = w.shape[0]
    num_pcs = d_in - 1

    # Row 0 of W pairs with x; rows 1.. pair with a.  Bias + x-term first.
    y = b + x * w[0:1, :]               # (1,U) + (B,1)*(1,U) -> (B,U)   [VPU]

    if num_pcs <= 8:
        # Tiny K: unrolled VPU broadcast-FMAs, skip the MXU pipeline entirely.
        for k in range(num_pcs):
            y = y + a[:, k:k + 1] * w[k + 1:k + 2, :]
    else:
        # General case: MXU matmul on the a-part only (concat still fused away).
        y = y + jnp.dot(a, w[1:, :], preferred_element_type=jnp.float32)

    o_ref[...] = jnp.maximum(y, 0.0).astype(o_ref.dtype)


def encoder_init(weight, bias):
    """One-time parameter prep (hoisted out of the hot path).

    weight : (units, 1 + num_pcs)  -- PyTorch nn.Linear layout (out, in)
    bias   : (units,)
    returns (w_t, b2d) with w_t = (1 + num_pcs, units), b2d = (1, units)
    """
    w_t = jnp.asarray(weight).T
    b2d = jnp.asarray(bias).reshape(1, -1)
    return w_t, b2d


def _vmem_limit_bytes(tile_b, d_in, units):
    lane = lambda n: _round_up(max(n, 1), 128)
    sub = lambda n: _round_up(max(n, 1), 8)
    # Per-grid-step tiles (x, a, out), double-buffered by the pipeline.
    per_step = 4 * sub(tile_b) * (lane(1) + lane(d_in - 1) + lane(units))
    resident = 4 * (sub(d_in) + sub(1)) * lane(units)
    need = 2 * per_step + 2 * resident
    # Generous headroom, but capped so it also fits v7x's 64 MiB physical VMEM.
    return int(min(48 << 20, max(16 << 20, 4 * need)))


@functools.partial(jax.jit, static_argnames=("tile_b",))
def encoder_forward(x, a, w_t, b2d, *, tile_b=512):
    """Pallas forward pass.

    x   : (B, 1)           float32
    a   : (B, num_pcs)     float32
    w_t : (1+num_pcs, U)   pre-transposed weight (from encoder_init)
    b2d : (1, U)           reshaped bias (from encoder_init)
    returns (B, U) float32
    """
    batch = x.shape[0]
    num_pcs = a.shape[1]
    d_in, units = w_t.shape

    # Large batch tiles (sublane-dense loads/stores, good HBM-roofline
    # fraction), never bigger than needed; keep the sublane dim % 8 == 0.
    tile_b = min(tile_b, _round_up(batch, 8))
    grid = (pl.cdiv(batch, tile_b),)

    return pl.pallas_call(
        encoder_kernel,
        out_shape=jax.ShapeDtypeStruct((batch, units), x.dtype),
        grid_spec=pltpu.PrefetchScalarGridSpec(
            num_scalar_prefetch=0,
            grid=grid,
            in_specs=[
                pl.BlockSpec((tile_b, 1), lambda i: (i, 0)),        # x tiles
                pl.BlockSpec((tile_b, num_pcs), lambda i: (i, 0)),  # a tiles
                pl.BlockSpec((d_in, units), lambda i: (0, 0)),      # W resident
                pl.BlockSpec((1, units), lambda i: (0, 0)),         # b resident
            ],
            out_specs=pl.BlockSpec((tile_b, units), lambda i: (i, 0)),
        ),
        compiler_params=pltpu.CompilerParams(
            dimension_semantics=("parallel",),   # shards batch loop on v7x 2-TC
            vmem_limit_bytes=_vmem_limit_bytes(tile_b, d_in, units),
        ),
    )(x, a, w_t, b2d)


def reference_forward(x, a, weight, bias):
    """Pure-JAX reference mirroring the PyTorch forward exactly."""
    xa = jnp.concatenate([x, a], axis=1)
    return jax.nn.relu(xa @ weight.T + bias)


if __name__ == "__main__":
    # Small shapes consistent with the module: batch=8, num_pcs=3, units=32.
    batch, num_pcs, units = 8, 3, 32
    d_in = 1 + num_pcs

    key = jax.random.PRNGKey(0)
    kx, ka, kw, kb = jax.random.split(key, 4)

    x = jax.random.normal(kx, (batch, 1), dtype=jnp.float32)
    a = jax.random.normal(ka, (batch, num_pcs), dtype=jnp.float32)

    # Deterministic init mimicking nn.Linear's U(-1/sqrt(in), 1/sqrt(in)).
    bound = 1.0 / jnp.sqrt(jnp.float32(d_in))
    weight = jax.random.uniform(kw, (units, d_in), dtype=jnp.float32,
                                minval=-bound, maxval=bound)
    bias = jax.random.uniform(kb, (units,), dtype=jnp.float32,
                              minval=-bound, maxval=bound)

    # Hoist the transpose/reshape out of the hot path (done once).
    w_t, b2d = encoder_init(weight, bias)

    out = encoder_forward(x, a, w_t, b2d)
    out = jax.block_until_ready(out)

    ref = reference_forward(x, a, weight, bias)
    assert out.shape == (batch, units), out.shape
    assert jnp.allclose(out, ref, atol=1e-5, rtol=1e-5), "mismatch vs reference"

    print("KERNEL_OK")
</pallas_src>

<mosaic_0001>
module attributes {stable_mosaic.version = 11 : i64} {
  func.func @encoder_kernel(%arg0: i32, %arg1: memref<8x1xf32, #tpu.memory_space<vmem>>, %arg2: memref<8x3xf32, #tpu.memory_space<vmem>>, %arg3: memref<4x32xf32, #tpu.memory_space<vmem>>, %arg4: memref<1x32xf32, #tpu.memory_space<vmem>>, %arg5: memref<8x32xf32, #tpu.memory_space<vmem>>) attributes {dimension_semantics = [#tpu.dimension_semantics<parallel>], iteration_bounds = array<i64: 1>, scalar_prefetch = 0 : i64, scratch_operands = 0 : i64, tpu.core_type = #tpu.core_type<tc>, window_params = [{transform_indices = @transform_0, window_bounds = array<i64: 8, 1>}, {transform_indices = @transform_1, window_bounds = array<i64: 8, 3>}, {pipeline_mode = #tpu.pipeline_mode<synchronous>, transform_indices = @transform_2, window_bounds = array<i64: 4, 32>}, {pipeline_mode = #tpu.pipeline_mode<synchronous>, transform_indices = @transform_3, window_bounds = array<i64: 1, 32>}, {transform_indices = @transform_4, window_bounds = array<i64: 8, 32>}]} {
    %c0 = arith.constant 0 : index
    %c0_0 = arith.constant 0 : index
    %0 = vector.load %arg1[%c0, %c0_0] : memref<8x1xf32, #tpu.memory_space<vmem>>, vector<8x1xf32>
    %c0_1 = arith.constant 0 : index
    %c0_2 = arith.constant 0 : index
    %1 = vector.load %arg2[%c0_1, %c0_2] : memref<8x3xf32, #tpu.memory_space<vmem>>, vector<8x3xf32>
    %c0_3 = arith.constant 0 : index
    %c0_4 = arith.constant 0 : index
    %2 = vector.load %arg3[%c0_3, %c0_4] : memref<4x32xf32, #tpu.memory_space<vmem>>, vector<4x32xf32>
    %c0_5 = arith.constant 0 : index
    %c0_6 = arith.constant 0 : index
    %3 = vector.load %arg4[%c0_5, %c0_6] : memref<1x32xf32, #tpu.memory_space<vmem>>, vector<1x32xf32>
    %4 = vector.extract_strided_slice %2 {offsets = [0, 0], sizes = [1, 32], strides = [1, 1]} : vector<4x32xf32> to vector<1x32xf32>
    %5 = vector.broadcast %0 : vector<8x1xf32> to vector<8x32xf32>
    %6 = vector.broadcast %4 : vector<1x32xf32> to vector<8x32xf32>
    %7 = arith.mulf %5, %6 : vector<8x32xf32>
    %8 = vector.broadcast %3 : vector<1x32xf32> to vector<8x32xf32>
    %9 = arith.addf %8, %7 : vector<8x32xf32>
    %10 = vector.extract_strided_slice %1 {offsets = [0, 0], sizes = [8, 1], strides = [1, 1]} : vector<8x3xf32> to vector<8x1xf32>
    %11 = vector.extract_strided_slice %2 {offsets = [1, 0], sizes = [1, 32], strides = [1, 1]} : vector<4x32xf32> to vector<1x32xf32>
    %12 = vector.broadcast %10 : vector<8x1xf32> to vector<8x32xf32>
    %13 = vector.broadcast %11 : vector<1x32xf32> to vector<8x32xf32>
    %14 = arith.mulf %12, %13 : vector<8x32xf32>
    %15 = arith.addf %9, %14 : vector<8x32xf32>
    %16 = vector.extract_strided_slice %1 {offsets = [0, 1], sizes = [8, 1], strides = [1, 1]} : vector<8x3xf32> to vector<8x1xf32>
    %17 = vector.extract_strided_slice %2 {offsets = [2, 0], sizes = [1, 32], strides = [1, 1]} : vector<4x32xf32> to vector<1x32xf32>
    %18 = vector.broadcast %16 : vector<8x1xf32> to vector<8x32xf32>
    %19 = vector.broadcast %17 : vector<1x32xf32> to vector<8x32xf32>
    %20 = arith.mulf %18, %19 : vector<8x32xf32>
    %21 = arith.addf %15, %20 : vector<8x32xf32>
    %22 = vector.extract_strided_slice %1 {offsets = [0, 2], sizes = [8, 1], strides = [1, 1]} : vector<8x3xf32> to vector<8x1xf32>
    %23 = vector.extract_strided_slice %2 {offsets = [3, 0], sizes = [1, 32], strides = [1, 1]} : vector<4x32xf32> to vector<1x32xf32>
    %24 = vector.broadcast %22 : vector<8x1xf32> to vector<8x32xf32>
    %25 = vector.broadcast %23 : vector<1x32xf32> to vector<8x32xf32>
    %26 = arith.mulf %24, %25 : vector<8x32xf32>
    %27 = arith.addf %21, %26 : vector<8x32xf32>
    %cst = arith.constant 0.000000e+00 : f32
    %28 = vector.broadcast %cst : f32 to vector<8x32xf32>
    %29 = arith.maximumf %27, %28 : vector<8x32xf32>
    %c0_7 = arith.constant 0 : index
    %c0_8 = arith.constant 0 : index
    %30 = vector.load %arg5[%c0_7, %c0_8] : memref<8x32xf32, #tpu.memory_space<vmem>>, vector<8x32xf32>
    tpu.vector_store %arg5[%c0_7, %c0_8], %29 {strides = array<i32>} : memref<8x32xf32, #tpu.memory_space<vmem>>, vector<8x32xf32>,
    return
  }
  func.func @transform_0(%arg0: i32) -> (i32, i32) {
    %c0_i32 = arith.constant 0 : i32
    %c0_i32_0 = arith.constant 0 : i32
    return %arg0, %c0_i32 : i32, i32
  }
  func.func @transform_1(%arg0: i32) -> (i32, i32) {
    %c0_i32 = arith.constant 0 : i32
    %c0_i32_0 = arith.constant 0 : i32
    return %arg0, %c0_i32 : i32, i32
  }
  func.func @transform_2(%arg0: i32) -> (i32, i32) {
    %c0_i32 = arith.constant 0 : i32
    %c0_i32_0 = arith.constant 0 : i32
    %c0_i32_1 = arith.constant 0 : i32
    return %c0_i32, %c0_i32_0 : i32, i32
  }
  func.func @transform_3(%arg0: i32) -> (i32, i32) {
    %c0_i32 = arith.constant 0 : i32
    %c0_i32_0 = arith.constant 0 : i32
    %c0_i32_1 = arith.constant 0 : i32
    return %c0_i32, %c0_i32_0 : i32, i32
  }
  func.func @transform_4(%arg0: i32) -> (i32, i32) {
    %c0_i32 = arith.constant 0 : i32
    %c0_i32_0 = arith.constant 0 : i32
    return %arg0, %c0_i32 : i32, i32
  }
}

</mosaic_0001>

<llo_original>
// kernel: encoder_forward.1
$region0: #{encoder_forward.1}
  #allocation0 [shape = 'u32[]', space=smem, size = 0x4, offset = 0x4, fixed_abs, tag = 'smem constant byte address 0x4 - core index']
  #allocation1 [shape = 'u32[144,128]{1,0:T(1,128)}', space=vmem, size = 0x12000, scoped, tag = 'internal scratch']
  %s0 = inlined_call_operand.vmem [shape: f32[8,1], index: 0, kind: input, shape index: {}]
  %s1 = inlined_call_operand.vmem [shape: f32[8,3], index: 1, kind: input, shape index: {}]
  %s2 = inlined_call_operand.vmem [shape: f32[4,32], index: 2, kind: input, shape index: {}]
  %s3 = inlined_call_operand.vmem [shape: f32[1,32], index: 3, kind: input, shape index: {}]
  %s4 = inlined_call_operand.hbm [shape: f32[8,32], index: 4, kind: output, shape index: {}]
  %s5 = sld [smem:[#allocation0]]
  $region26: #{encoder_forward.1} parent=0
    _
  %s7 = ssub.s32 1, %s5
  %s8 = scalar_select 0, %s7, %s5
  $region1: #{encoder_forward.1} parent=0
    #allocation2 [shape = 'u8[4096]{0}', space=vmem, size = 0x1000, scoped, tag = 'output window, operand 0, single buffered']
    #allocation3 [shape = 's32[1]{0}', space=sflag, size = 0x4, scoped, tag = 'scoped memory for encoder_forward.1']
    %9 = vsyncpa [#allocation3], 0
    // Predicated region
    $region2: #{encoder_forward.1} parent=1 // pred_check
      _
    $region3: #{encoder_forward.1} parent=1 // pred_check_branch
      %11 = sbr.rel (0) target = $region5
    $region4: #{encoder_forward.1} parent=1 // pred_region
      _
    $region5: #{encoder_forward.1} parent=1 // pred_fallthru
      _
    // Predicated region
    $region6: #{encoder_forward.1} parent=1 // pred_check
      _
    $region7: #{encoder_forward.1} parent=1 // pred_check_branch
      %13 = sbr.rel (0) target = $region9
    $region8: #{encoder_forward.1} parent=1 // pred_region
      _
    $region9: #{encoder_forward.1} parent=1 // pred_fallthru
      _
    // Predicated region
    $region10: #{encoder_forward.1} parent=1 // pred_check
      _
    $region11: #{encoder_forward.1} parent=1 // pred_check_branch
      %15 = sbr.rel (0) target = $region13
    $region12: #{encoder_forward.1} parent=1 // pred_region
      _
    $region13: #{encoder_forward.1} parent=1 // pred_fallthru
      _
    // Predicated region
    $region14: #{encoder_forward.1} parent=1 // pred_check
      _
    $region15: #{encoder_forward.1} parent=1 // pred_check_branch
      %17 = sbr.rel (0) target = $region17
    $region16: #{encoder_forward.1} parent=1 // pred_region
      _
    $region17: #{encoder_forward.1} parent=1 // pred_fallthru
      _
    %v18 = vld [vmem:[%s0] sm:$0xff]
    %v19 = vld [vmem:[%s1] sm:$0xff]
    %v20 = vld [vmem:[%s2] sm:$0xf]
    %v21 = vld [vmem:[%s3] sm:$0x1]
    %23 = vset.pattern.permute.xlu0 0
    %24 = vperm.xlu0 %23, %v18
    %v25 = vpop.permute.xlu0 %24
    %v27 = vlaneseq
    %v28 = vshrl.u32 %v27, 7
    %v29 = vsub.s32 0, %v28
    %v30 = vrot.slane %v20, %v29
    %v31 = vmul.f32 %v25, %v30
    %v33 = vlaneseq
    %v34 = vshrl.u32 %v33, 7
    %v35 = vsub.s32 0, %v34
    %v36 = vrot.slane %v21, %v35
    %v38 = vadd.f32 %v36, %v31
    %40 = vset.pattern.permute.xlu0 0
    %41 = vperm.xlu0 %40, %v19
    %v42 = vpop.permute.xlu0 %41
    %v44 = vlaneseq
    %v45 = vshrl.u32 %v44, 7
    %v46 = vsub.s32 1, %v45
    %v47 = vrot.slane %v20, %v46
    %v48 = vmul.f32 %v42, %v47
    %v49 = vadd.f32 %v38, %v48
    %50 = vset.pattern.permute.xlu0 1
    %51 = vperm.xlu0 %50, %v19
    %v52 = vpop.permute.xlu0 %51
    %v54 = vlaneseq
    %v55 = vshrl.u32 %v54, 7
    %v56 = vsub.s32 2, %v55
    %v57 = vrot.slane %v20, %v56
    %v58 = vmul.f32 %v52, %v57
    %v59 = vadd.f32 %v49, %v58
    %60 = vset.pattern.permute.xlu0 2
    %61 = vperm.xlu0 %60, %v19
    %v62 = vpop.permute.xlu0 %61
    %v64 = vlaneseq
    %v65 = vshrl.u32 %v64, 7
    %v66 = vsub.s32 3, %v65
    %v67 = vrot.slane %v20, %v66
    %v68 = vmul.f32 %v62, %v67
    %v69 = vadd.f32 %v59, %v68
    %v70 = vmax.f32 %v69, 0.0
    %vm71 = vcmask 261120
    %72 = vst.msk [vmem:[#allocation2] sm:$0xff] %vm71, %v70
    // Predicated region
    $region18: #{encoder_forward.1} parent=1 // pred_check
      _
    $region19: #{encoder_forward.1} parent=1 // pred_check_branch
      %74 = sbr.rel (0) target = $region21
    $region20: #{encoder_forward.1} parent=1 // pred_region
      %s76 = ssub.s32 128, 128
      %77 = vsyncadd [#allocation3], %s76
      %s79 = sshll.u32 [#allocation2], 4
      %s80 = int_to_ptr.vmem [resolvable:$true] %s79
      %82 = dma.vmem_to_hbm [thread:$0]  %s80, 128, %s4, [#allocation3]
    $region21: #{encoder_forward.1} parent=1 // pred_fallthru
      _
    // Predicated region
    $region22: #{encoder_forward.1} parent=1 // pred_check
      _
    $region23: #{encoder_forward.1} parent=1 // pred_check_branch
      %84 = sbr.rel (0) target = $region25
    $region24: #{encoder_forward.1} parent=1 // pred_region
      %85 = dma.done [#allocation3], 128
    $region25: #{encoder_forward.1} parent=1 // pred_fallthru
      _
    %86 = vsyncpa [#allocation3], 1

</llo_original>
